<compile_context>
chip_gen: v7x
topology: tpu7x:2x2x1
jax: 0.10.0
libtpu: 0.0.40
codegen_flags: <defaults>
</compile_context>

<pallas_src>
import functools

import jax
import jax.numpy as jnp
from jax.experimental import pallas as pl
from jax.experimental.pallas import tpu as pltpu

LN_EPS = 1e-12


# ----------------------------------------------------------------------------
# tiling / budgeting helpers
# ----------------------------------------------------------------------------
def _round_up(x, m):
    return ((x + m - 1) // m) * m


def _tile_m(M):
    """Row tile: the whole M if small (block == full dim is always legal),
    otherwise 256 with partial edge blocks handled by the grid."""
    return M if M <= 256 else 256


def _tile_n(N):
    """Column tile: full width up to 2048, else largest 128-multiple divisor."""
    if N <= 2048:
        return N
    for tn in range(2048, 127, -128):
        if N % tn == 0:
            return tn
    return N


def _tile_k(K):
    """Reduction tile for K-tiled matmuls: full K up to 1024, else a
    128-multiple divisor (keeps the live weight block to a few MiB)."""
    if K <= 1024:
        return K
    for tk in range(512, 127, -128):
        if K % tk == 0:
            return tk
    return K


def _tile_s(S):
    if S <= 256:
        return S
    for ts in range(256, 7, -8):
        if S % ts == 0:
            return ts
    return 256


def _vmem_limit(block_bytes):
    """Explicit scoped-VMEM budget: 2x (double buffering) + headroom, clamped
    so it is safe on every generation (v5e/v6e 128 MiB, v7x 64 MiB physical)."""
    need = 2 * int(block_bytes) + (4 << 20)
    return int(min(56 << 20, max(16 << 20, need)))


# ----------------------------------------------------------------------------
# Pallas kernels
# ----------------------------------------------------------------------------
def dense_kernel(x_ref, w_ref, b_ref, o_ref, *, act):
    y = jnp.dot(x_ref[...], w_ref[...], preferred_element_type=jnp.float32)
    y = y + b_ref[...]
    if act == "gelu":
        # tanh-approximate GELU (BERT hidden activation)
        y = 0.5 * y * (1.0 + jnp.tanh(0.7978845608028654 * (y + 0.044715 * y * y * y)))
    elif act == "tanh":
        y = jnp.tanh(y)
    o_ref[...] = y.astype(o_ref.dtype)


def dense_add_ln_kernel(x_ref, w_ref, b_ref, r_ref, g_ref, bt_ref, o_ref, acc_ref):
    """K-tiled: matmul accumulate in f32 scratch; bias + residual + LayerNorm
    fused into the last-K epilogue."""
    k = pl.program_id(1)

    @pl.when(k == 0)
    def _():
        acc_ref[...] = jnp.zeros_like(acc_ref)

    acc_ref[...] += jnp.dot(x_ref[...], w_ref[...],
                            preferred_element_type=jnp.float32)

    @pl.when(k == pl.num_programs(1) - 1)
    def _():
        y = acc_ref[...] + b_ref[...] + r_ref[...].astype(jnp.float32)
        mu = jnp.mean(y, axis=-1, keepdims=True)
        var = jnp.mean((y - mu) ** 2, axis=-1, keepdims=True)
        o_ref[...] = ((y - mu) * jax.lax.rsqrt(var + LN_EPS) * g_ref[...]
                      + bt_ref[...]).astype(o_ref.dtype)


def emb_add_ln_kernel(w_ref, p_ref, t_ref, ig_ref, g_ref, b_ref, o_ref):
    """word + pos + token embeddings, LayerNorm (f32 stats) and the IG scale
    fused into one epilogue."""
    x = (w_ref[...].astype(jnp.float32) + p_ref[...].astype(jnp.float32)
         + t_ref[...].astype(jnp.float32))
    mu = jnp.mean(x, axis=-1, keepdims=True)
    var = jnp.mean((x - mu) ** 2, axis=-1, keepdims=True)
    y = (x - mu) * jax.lax.rsqrt(var + LN_EPS) * g_ref[...] + b_ref[...]
    o_ref[...] = (y * ig_ref[...]).astype(o_ref.dtype)


def _mha_heads(q, k, v, mask, ctx_ref, probs_ref, n_heads, dh):
    """q/k/v: (S, n_heads*dh) bf16, mask: (1, S) f32.  Writes per-head context
    directly into ctx_ref slices (no concatenate temp)."""
    for h in range(n_heads):
        qh = q[:, h * dh:(h + 1) * dh]
        kh = k[:, h * dh:(h + 1) * dh]
        vh = v[:, h * dh:(h + 1) * dh]
        # contract last dims directly: no explicit transpose of K
        s = jax.lax.dot_general(qh, kh, (((1,), (1,)), ((), ())),
                                preferred_element_type=jnp.float32)
        s = s + mask                        # (S,S) + (1,S) broadcast
        s = s - jnp.max(s, axis=-1, keepdims=True)
        e = jnp.exp(s)
        # exact reciprocal: probs are a public output and must sum to ~1
        p = e * pl.reciprocal(jnp.sum(e, axis=-1, keepdims=True))
        if probs_ref is not None:
            probs_ref[h] = p.astype(probs_ref.dtype)
        ctx_ref[:, h * dh:(h + 1) * dh] = jnp.dot(
            p.astype(v.dtype), vh, preferred_element_type=jnp.float32
        ).astype(ctx_ref.dtype)


def attn_group_kernel(q_ref, k_ref, v_ref, m_ref, ctx_ref, *maybe_probs, heads, dh):
    probs_ref = maybe_probs[0] if maybe_probs else None
    _mha_heads(q_ref[...], k_ref[...], v_ref[...], m_ref[...],
               ctx_ref, probs_ref, heads, dh)


def attn_full_kernel(qkv_ref, m_ref, ctx_ref, *maybe_probs, heads, dh, hidden):
    probs_ref = maybe_probs[0] if maybe_probs else None
    qkv = qkv_ref[...]
    _mha_heads(qkv[:, :hidden], qkv[:, hidden:2 * hidden], qkv[:, 2 * hidden:],
               m_ref[...], ctx_ref, probs_ref, heads, dh)


# ----------------------------------------------------------------------------
# Wrappers around pallas_call
# ----------------------------------------------------------------------------
def dense(x, w, b, act=None, out_dtype=jnp.bfloat16):
    M, K = x.shape
    N = w.shape[1]
    TM = _tile_m(M)
    TN = _tile_n(N)
    nm = pl.cdiv(M, TM)
    nn = N // TN
    blk = (TM * K * 2 + K * TN * 2 + TN * 4
           + TM * TN * jnp.dtype(out_dtype).itemsize)
    # grid order: N tiles outer, M tiles inner -> weight block index constant
    # across the inner sweep (stays VMEM resident; only x tiles stream).
    return pl.pallas_call(
        functools.partial(dense_kernel, act=act),
        grid=(nn, nm),
        in_specs=[
            pl.BlockSpec((TM, K), lambda j, i: (i, 0)),
            pl.BlockSpec((K, TN), lambda j, i: (0, j)),
            pl.BlockSpec((1, TN), lambda j, i: (0, j)),
        ],
        out_specs=pl.BlockSpec((TM, TN), lambda j, i: (i, j)),
        out_shape=jax.ShapeDtypeStruct((M, N), out_dtype),
        compiler_params=pltpu.CompilerParams(
            dimension_semantics=("parallel", "parallel"),
            vmem_limit_bytes=_vmem_limit(blk)),
    )(x, w, b.reshape(1, N).astype(jnp.float32))


def dense_add_ln(x, w, b, res, gamma, beta):
    M, K = x.shape
    N = w.shape[1]
    TM = _tile_m(M)
    TK = _tile_k(K)
    nm = pl.cdiv(M, TM)
    nk = K // TK
    blk = (TM * TK * 2 + TK * N * 2 + 3 * N * 4 + 2 * TM * N * 2 + TM * N * 4)
    return pl.pallas_call(
        dense_add_ln_kernel,
        grid=(nm, nk),
        in_specs=[
            pl.BlockSpec((TM, TK), lambda i, k: (i, k)),
            pl.BlockSpec((TK, N), lambda i, k: (k, 0)),
            pl.BlockSpec((1, N), lambda i, k: (0, 0)),
            pl.BlockSpec((TM, N), lambda i, k: (i, 0)),
            pl.BlockSpec((1, N), lambda i, k: (0, 0)),
            pl.BlockSpec((1, N), lambda i, k: (0, 0)),
        ],
        out_specs=pl.BlockSpec((TM, N), lambda i, k: (i, 0)),
        out_shape=jax.ShapeDtypeStruct((M, N), jnp.bfloat16),
        scratch_shapes=[pltpu.VMEM((TM, N), jnp.float32)],
        compiler_params=pltpu.CompilerParams(
            dimension_semantics=("parallel", "arbitrary"),
            vmem_limit_bytes=_vmem_limit(blk)),
    )(x, w, b.reshape(1, N).astype(jnp.float32), res,
      gamma.reshape(1, N), beta.reshape(1, N))


def emb_add_layernorm(word, pos, tok, ig_rows, gamma, beta):
    """word/tok: [B,S,H] bf16, pos: [S,H] bf16, ig_rows: [B,S,1] f32."""
    B, S, H = word.shape
    TS = _tile_s(S)
    ns = pl.cdiv(S, TS)
    row3 = lambda b, s: (b, s, 0)
    vec = pl.BlockSpec((1, H), lambda b, s: (0, 0))
    blk = 3 * TS * H * 2 + TS * 4 + 2 * H * 4 + TS * H * 2
    return pl.pallas_call(
        emb_add_ln_kernel,
        grid=(B, ns),
        in_specs=[
            pl.BlockSpec((None, TS, H), row3),
            pl.BlockSpec((TS, H), lambda b, s: (s, 0)),   # pos: no batch bcast
            pl.BlockSpec((None, TS, H), row3),
            pl.BlockSpec((None, TS, 1), row3),
            vec, vec,
        ],
        out_specs=pl.BlockSpec((None, TS, H), row3),
        out_shape=jax.ShapeDtypeStruct((B, S, H), jnp.bfloat16),
        compiler_params=pltpu.CompilerParams(
            dimension_semantics=("parallel", "parallel"),
            vmem_limit_bytes=_vmem_limit(blk)),
    )(word, pos, tok, ig_rows, gamma.reshape(1, H), beta.reshape(1, H))


def attention(qkv3, ext_mask, n_heads, output_attentions=True,
              probs_dtype=jnp.float32):
    """qkv3: [B, S, 3H] bf16 (scale folded into Q), ext_mask: [B, 1, S] f32.
    Returns ctx [B, S, H] bf16 and (optionally) probs [B, nH, S, S]."""
    B, S, threeH = qkv3.shape
    H = threeH // 3
    dh = H // n_heads

    # smallest head-group whose width is a 128-lane multiple (lane-dense ctx store)
    hp = None
    for cand in range(1, n_heads + 1):
        if n_heads % cand == 0 and (cand * dh) % 128 == 0:
            hp = cand
            break

    ctx_shape = jax.ShapeDtypeStruct((B, S, H), jnp.bfloat16)
    pbytes = jnp.dtype(probs_dtype).itemsize

    if hp is not None:
        ng = n_heads // hp
        gd = hp * dh
        kernel = functools.partial(attn_group_kernel, heads=hp, dh=dh)
        grid = (B, ng)
        in_specs = [
            pl.BlockSpec((None, S, gd), lambda b, g: (b, 0, g)),           # Q slice
            pl.BlockSpec((None, S, gd), lambda b, g: (b, 0, ng + g)),      # K slice
            pl.BlockSpec((None, S, gd), lambda b, g: (b, 0, 2 * ng + g)),  # V slice
            pl.BlockSpec((None, 1, S), lambda b, g: (b, 0, 0)),
        ]
        out_specs = [pl.BlockSpec((None, S, gd), lambda b, g: (b, 0, g))]
        out_shape = [ctx_shape]
        if output_attentions:
            out_specs.append(pl.BlockSpec((None, hp, S, S), lambda b, g: (b, g, 0, 0)))
            out_shape.append(jax.ShapeDtypeStruct((B, n_heads, S, S), probs_dtype))
        operands = (qkv3, qkv3, qkv3, ext_mask)
        dims = ("parallel", "parallel")
        blk = 4 * S * gd * 2 + S * 4 + (hp * S * S * pbytes if output_attentions else 0)
    else:
        # model too narrow for 128-lane head groups: one block with all heads
        kernel = functools.partial(attn_full_kernel, heads=n_heads, dh=dh, hidden=H)
        grid = (B,)
        in_specs = [
            pl.BlockSpec((None, S, threeH), lambda b: (b, 0, 0)),
            pl.BlockSpec((None, 1, S), lambda b: (b, 0, 0)),
        ]
        out_specs = [pl.BlockSpec((None, S, H), lambda b: (b, 0, 0))]
        out_shape = [ctx_shape]
        if output_attentions:
            out_specs.append(pl.BlockSpec((None, n_heads, S, S), lambda b: (b, 0, 0, 0)))
            out_shape.append(jax.ShapeDtypeStruct((B, n_heads, S, S), probs_dtype))
        operands = (qkv3, ext_mask)
        dims = ("parallel",)
        blk = (S * threeH * 2 + S * H * 2 + S * 4
               + (n_heads * S * S * pbytes if output_attentions else 0))

    outs = pl.pallas_call(
        kernel,
        grid=grid,
        in_specs=in_specs,
        out_specs=tuple(out_specs),
        out_shape=tuple(out_shape),
        compiler_params=pltpu.CompilerParams(
            dimension_semantics=dims, vmem_limit_bytes=_vmem_limit(blk)),
    )(*operands)
    if output_attentions:
        return outs[0], outs[1]
    return outs[0], None


# ----------------------------------------------------------------------------
# Deterministic parameter initialization (synthetic BERT, no checkpoint)
# ----------------------------------------------------------------------------
def init_params(key, vocab, hidden, n_layers, n_heads, inter, max_pos=512,
                type_vocab=2):
    std = 0.02

    def nrm(k, shape):
        return std * jax.random.normal(k, shape, jnp.float32)

    keys = iter(jax.random.split(key, 8 + n_layers * 8))
    p = {
        "word_emb": nrm(next(keys), (vocab, hidden)),
        "pos_emb": nrm(next(keys), (max_pos, hidden)),
        "type_emb": nrm(next(keys), (type_vocab, hidden)),
        "emb_ln_g": jnp.ones((hidden,), jnp.float32),
        "emb_ln_b": jnp.zeros((hidden,), jnp.float32),
        "pool_w": nrm(next(keys), (hidden, hidden)),
        "pool_b": jnp.zeros((hidden,), jnp.float32),
        "layers": [],
    }
    for _ in range(n_layers):
        layer = {
            "wq": nrm(next(keys), (hidden, hidden)), "bq": jnp.zeros((hidden,)),
            "wk": nrm(next(keys), (hidden, hidden)), "bk": jnp.zeros((hidden,)),
            "wv": nrm(next(keys), (hidden, hidden)), "bv": jnp.zeros((hidden,)),
            "wo": nrm(next(keys), (hidden, hidden)), "bo": jnp.zeros((hidden,)),
            "ln1_g": jnp.ones((hidden,)), "ln1_b": jnp.zeros((hidden,)),
            "wi": nrm(next(keys), (hidden, inter)), "bi": jnp.zeros((inter,)),
            "wo2": nrm(next(keys), (inter, hidden)), "bo2": jnp.zeros((hidden,)),
            "ln2_g": jnp.ones((hidden,)), "ln2_b": jnp.zeros((hidden,)),
        }
        p["layers"].append(layer)
    return p


def prepare_params(p, n_heads):
    """Cast matmul weights / embedding tables to bf16, fuse QKV (fold
    1/sqrt(dh) into Wq/bq).  LayerNorm params stay f32."""
    H = p["word_emb"].shape[1]
    dh = H // n_heads
    scale = 1.0 / float(dh) ** 0.5
    fp = {
        "word_emb": p["word_emb"].astype(jnp.bfloat16),
        "pos_emb": p["pos_emb"].astype(jnp.bfloat16),
        "type_emb": p["type_emb"].astype(jnp.bfloat16),
        "emb_ln_g": p["emb_ln_g"].astype(jnp.float32),
        "emb_ln_b": p["emb_ln_b"].astype(jnp.float32),
        "pool_w": p["pool_w"].astype(jnp.bfloat16),
        "pool_b": p["pool_b"].astype(jnp.float32),
        "layers": [],
    }
    for lp in p["layers"]:
        fp["layers"].append({
            "w_qkv": jnp.concatenate(
                [lp["wq"] * scale, lp["wk"], lp["wv"]], axis=1).astype(jnp.bfloat16),
            "b_qkv": jnp.concatenate(
                [lp["bq"] * scale, lp["bk"], lp["bv"]]).astype(jnp.float32),
            "wo": lp["wo"].astype(jnp.bfloat16), "bo": lp["bo"].astype(jnp.float32),
            "ln1_g": lp["ln1_g"].astype(jnp.float32), "ln1_b": lp["ln1_b"].astype(jnp.float32),
            "wi": lp["wi"].astype(jnp.bfloat16), "bi": lp["bi"].astype(jnp.float32),
            "wo2": lp["wo2"].astype(jnp.bfloat16), "bo2": lp["bo2"].astype(jnp.float32),
            "ln2_g": lp["ln2_g"].astype(jnp.float32), "ln2_b": lp["ln2_b"].astype(jnp.float32),
        })
    return fp


# ----------------------------------------------------------------------------
# BertModelWrapper.forward equivalent
# ----------------------------------------------------------------------------
def bert_model_wrapper_forward(params, input_ids, attention_mask,
                               token_type_ids, n_heads, ig=1,
                               output_attentions=True):
    B, S = input_ids.shape
    H = params["word_emb"].shape[1]

    if isinstance(ig, (int, float)):
        assert 0.0 <= ig <= 1.0, "IG ratio cannot be out of the range 0-1"
        ig_rows = jnp.full((B, S, 1), float(ig), jnp.float32)
    else:
        ig_rows = jnp.asarray(ig, jnp.float32)
        assert ig_rows.shape == (B, S, 1), "Rationale mask must be [B, S, 1]"

    # --- bert_embeddings (gathers in XLA; add + LayerNorm + ig fused) --------
    word = jnp.take(params["word_emb"], input_ids, axis=0)            # [B,S,H] bf16
    pos = params["pos_emb"][:S]                                       # [S,H]   bf16
    tok = jnp.take(params["type_emb"], token_type_ids, axis=0)        # [B,S,H] bf16
    h3 = emb_add_layernorm(word, pos, tok, ig_rows,
                           params["emb_ln_g"], params["emb_ln_b"])    # bf16 [B,S,H]
    # embeddings dropout -> identity (eval)

    # --- extended attention mask ---------------------------------------------
    ext_mask = (1.0 - attention_mask.astype(jnp.float32))[:, None, :] * -10000.0  # [B,1,S]

    # --- encoder --------------------------------------------------------------
    h = h3.reshape(B * S, H)
    attentions = []
    for lp in params["layers"]:
        qkv = dense(h, lp["w_qkv"], lp["b_qkv"])                      # [B*S,3H] bf16
        ctx, probs = attention(qkv.reshape(B, S, 3 * H), ext_mask, n_heads,
                               output_attentions=output_attentions)
        if output_attentions:
            attentions.append(probs)                                  # [B,nH,S,S] f32
        # attention-output dense + bias + residual + LayerNorm (fused, K-tiled)
        h = dense_add_ln(ctx.reshape(B * S, H), lp["wo"], lp["bo"], h,
                         lp["ln1_g"], lp["ln1_b"])
        # FFN
        inter = dense(h, lp["wi"], lp["bi"], act="gelu")              # bf16
        h = dense_add_ln(inter, lp["wo2"], lp["bo2"], h,
                         lp["ln2_g"], lp["ln2_b"])

    seq_bf16 = h.reshape(B, S, H)
    sequence_output = seq_bf16.astype(jnp.float32)

    # --- pooler: dense(tanh) on [CLS] -----------------------------------------
    cls = seq_bf16[:, 0, :]                                           # [B,H] bf16
    pooled_output = dense(cls, params["pool_w"], params["pool_b"],
                          act="tanh", out_dtype=jnp.float32)

    return sequence_output, pooled_output, tuple(attentions)


# ----------------------------------------------------------------------------
if __name__ == "__main__":
    B, S = 2, 8
    VOCAB, HIDDEN, N_LAYERS, N_HEADS, INTER = 100, 32, 2, 4, 64

    raw_params = init_params(jax.random.PRNGKey(0), VOCAB, HIDDEN, N_LAYERS,
                             N_HEADS, INTER)
    params = prepare_params(raw_params, N_HEADS)

    k_ids, _ = jax.random.split(jax.random.PRNGKey(0))
    input_ids = jax.random.randint(k_ids, (B, S), 1, VOCAB, dtype=jnp.int32)
    attention_mask = jnp.ones((B, S), jnp.int32).at[1, S - 1].set(0)
    token_type_ids = jnp.zeros((B, S), jnp.int32)

    seq_out, pooled, attns = bert_model_wrapper_forward(
        params, input_ids, attention_mask, token_type_ids, n_heads=N_HEADS)

    jax.block_until_ready((seq_out, pooled, attns))
    assert seq_out.shape == (B, S, HIDDEN)
    assert pooled.shape == (B, HIDDEN)
    assert len(attns) == N_LAYERS and attns[0].shape == (B, N_HEADS, S, S)
    print("KERNEL_OK")
</pallas_src>

<mosaic_0001>
module attributes {stable_mosaic.version = 11 : i64} {
  func.func @emb_add_ln_kernel(%arg0: i32, %arg1: i32, %arg2: memref<1x8x32xbf16, #tpu.memory_space<vmem>>, %arg3: memref<8x32xbf16, #tpu.memory_space<vmem>>, %arg4: memref<1x8x32xbf16, #tpu.memory_space<vmem>>, %arg5: memref<1x8x1xf32, #tpu.memory_space<vmem>>, %arg6: memref<1x32xf32, #tpu.memory_space<vmem>>, %arg7: memref<1x32xf32, #tpu.memory_space<vmem>>, %arg8: memref<1x8x32xbf16, #tpu.memory_space<vmem>>) attributes {dimension_semantics = [#tpu.dimension_semantics<parallel>, #tpu.dimension_semantics<parallel>], iteration_bounds = array<i64: 2, 1>, scalar_prefetch = 0 : i64, scratch_operands = 0 : i64, tpu.core_type = #tpu.core_type<tc>, window_params = [{transform_indices = @transform_0, window_bounds = array<i64: 1, 8, 32>}, {transform_indices = @transform_1, window_bounds = array<i64: 8, 32>}, {transform_indices = @transform_2, window_bounds = array<i64: 1, 8, 32>}, {transform_indices = @transform_3, window_bounds = array<i64: 1, 8, 1>}, {pipeline_mode = #tpu.pipeline_mode<synchronous>, transform_indices = @transform_4, window_bounds = array<i64: 1, 32>}, {pipeline_mode = #tpu.pipeline_mode<synchronous>, transform_indices = @transform_5, window_bounds = array<i64: 1, 32>}, {transform_indices = @transform_6, window_bounds = array<i64: 1, 8, 32>}]} {
    %c0 = arith.constant 0 : index
    %c0_0 = arith.constant 0 : index
    %c0_1 = arith.constant 0 : index
    %0 = vector.load %arg2[%c0, %c0_0, %c0_1] : memref<1x8x32xbf16, #tpu.memory_space<vmem>>, vector<1x8x32xbf16>
    %1 = vector.shape_cast %0 : vector<1x8x32xbf16> to vector<8x32xbf16>
    %2 = arith.extf %1 : vector<8x32xbf16> to vector<8x32xf32>
    %c0_2 = arith.constant 0 : index
    %c0_3 = arith.constant 0 : index
    %3 = vector.load %arg3[%c0_2, %c0_3] : memref<8x32xbf16, #tpu.memory_space<vmem>>, vector<8x32xbf16>
    %4 = arith.extf %3 : vector<8x32xbf16> to vector<8x32xf32>
    %5 = arith.addf %2, %4 : vector<8x32xf32>
    %c0_4 = arith.constant 0 : index
    %c0_5 = arith.constant 0 : index
    %c0_6 = arith.constant 0 : index
    %6 = vector.load %arg4[%c0_4, %c0_5, %c0_6] : memref<1x8x32xbf16, #tpu.memory_space<vmem>>, vector<1x8x32xbf16>
    %7 = vector.shape_cast %6 : vector<1x8x32xbf16> to vector<8x32xbf16>
    %8 = arith.extf %7 : vector<8x32xbf16> to vector<8x32xf32>
    %9 = arith.addf %5, %8 : vector<8x32xf32>
    %cst = arith.constant dense<0.000000e+00> : vector<8xf32>
    %10 = vector.multi_reduction <add>, %9, %cst [1] : vector<8x32xf32> to vector<8xf32>
    %11 = vector.shape_cast %10 : vector<8xf32> to vector<8x1xf32>
    %cst_7 = arith.constant 3.200000e+01 : f32
    %12 = vector.broadcast %cst_7 : f32 to vector<8x1xf32>
    %13 = arith.divf %11, %12 : vector<8x1xf32>
    %14 = vector.broadcast %13 : vector<8x1xf32> to vector<8x32xf32>
    %15 = arith.subf %9, %14 : vector<8x32xf32>
    %16 = arith.mulf %15, %15 : vector<8x32xf32>
    %cst_8 = arith.constant dense<0.000000e+00> : vector<8xf32>
    %17 = vector.multi_reduction <add>, %16, %cst_8 [1] : vector<8x32xf32> to vector<8xf32>
    %18 = vector.shape_cast %17 : vector<8xf32> to vector<8x1xf32>
    %cst_9 = arith.constant 3.200000e+01 : f32
    %19 = vector.broadcast %cst_9 : f32 to vector<8x1xf32>
    %20 = arith.divf %18, %19 : vector<8x1xf32>
    %21 = vector.broadcast %13 : vector<8x1xf32> to vector<8x32xf32>
    %22 = arith.subf %9, %21 : vector<8x32xf32>
    %cst_10 = arith.constant 9.99999996E-13 : f32
    %23 = vector.broadcast %cst_10 : f32 to vector<8x1xf32>
    %24 = arith.addf %20, %23 : vector<8x1xf32>
    %25 = math.rsqrt %24 : vector<8x1xf32>
    %26 = vector.broadcast %25 : vector<8x1xf32> to vector<8x32xf32>
    %27 = arith.mulf %22, %26 : vector<8x32xf32>
    %c0_11 = arith.constant 0 : index
    %c0_12 = arith.constant 0 : index
    %28 = vector.load %arg6[%c0_11, %c0_12] : memref<1x32xf32, #tpu.memory_space<vmem>>, vector<1x32xf32>
    %29 = vector.broadcast %28 : vector<1x32xf32> to vector<8x32xf32>
    %30 = arith.mulf %27, %29 : vector<8x32xf32>
    %c0_13 = arith.constant 0 : index
    %c0_14 = arith.constant 0 : index
    %31 = vector.load %arg7[%c0_13, %c0_14] : memref<1x32xf32, #tpu.memory_space<vmem>>, vector<1x32xf32>
    %32 = vector.broadcast %31 : vector<1x32xf32> to vector<8x32xf32>
    %33 = arith.addf %30, %32 : vector<8x32xf32>
    %c0_15 = arith.constant 0 : index
    %c0_16 = arith.constant 0 : index
    %c0_17 = arith.constant 0 : index
    %34 = vector.load %arg5[%c0_15, %c0_16, %c0_17] : memref<1x8x1xf32, #tpu.memory_space<vmem>>, vector<1x8x1xf32>
    %35 = vector.shape_cast %34 : vector<1x8x1xf32> to vector<8x1xf32>
    %36 = vector.broadcast %35 : vector<8x1xf32> to vector<8x32xf32>
    %37 = arith.mulf %33, %36 : vector<8x32xf32>
    %38 = arith.truncf %37 : vector<8x32xf32> to vector<8x32xbf16>
    %c0_18 = arith.constant 0 : index
    %c0_19 = arith.constant 0 : index
    %c0_20 = arith.constant 0 : index
    %39 = vector.load %arg8[%c0_18, %c0_19, %c0_20] : memref<1x8x32xbf16, #tpu.memory_space<vmem>>, vector<1x8x32xbf16>
    %40 = vector.shape_cast %39 : vector<1x8x32xbf16> to vector<8x32xbf16>
    %41 = vector.shape_cast %38 : vector<8x32xbf16> to vector<1x8x32xbf16>
    tpu.vector_store %arg8[%c0_18, %c0_19, %c0_20], %41 {strides = array<i32>} : memref<1x8x32xbf16, #tpu.memory_space<vmem>>, vector<1x8x32xbf16>,
    return
  }
  func.func @transform_0(%arg0: i32, %arg1: i32) -> (i32, i32, i32) {
    %c0_i32 = arith.constant 0 : i32
    %c0_i32_0 = arith.constant 0 : i32
    return %arg0, %arg1, %c0_i32 : i32, i32, i32
  }
  func.func @transform_1(%arg0: i32, %arg1: i32) -> (i32, i32) {
    %c0_i32 = arith.constant 0 : i32
    %c0_i32_0 = arith.constant 0 : i32
    return %arg1, %c0_i32 : i32, i32
  }
  func.func @transform_2(%arg0: i32, %arg1: i32) -> (i32, i32, i32) {
    %c0_i32 = arith.constant 0 : i32
    %c0_i32_0 = arith.constant 0 : i32
    return %arg0, %arg1, %c0_i32 : i32, i32, i32
  }
  func.func @transform_3(%arg0: i32, %arg1: i32) -> (i32, i32, i32) {
    %c0_i32 = arith.constant 0 : i32
    %c0_i32_0 = arith.constant 0 : i32
    return %arg0, %arg1, %c0_i32 : i32, i32, i32
  }
  func.func @transform_4(%arg0: i32, %arg1: i32) -> (i32, i32) {
    %c0_i32 = arith.constant 0 : i32
    %c0_i32_0 = arith.constant 0 : i32
    %c0_i32_1 = arith.constant 0 : i32
    return %c0_i32, %c0_i32_0 : i32, i32
  }
  func.func @transform_5(%arg0: i32, %arg1: i32) -> (i32, i32) {
    %c0_i32 = arith.constant 0 : i32
    %c0_i32_0 = arith.constant 0 : i32
    %c0_i32_1 = arith.constant 0 : i32
    return %c0_i32, %c0_i32_0 : i32, i32
  }
  func.func @transform_6(%arg0: i32, %arg1: i32) -> (i32, i32, i32) {
    %c0_i32 = arith.constant 0 : i32
    %c0_i32_0 = arith.constant 0 : i32
    return %arg0, %arg1, %c0_i32 : i32, i32, i32
  }
}

</mosaic_0001>

<llo_original>
// kernel: tpu_custom_call.1
$region0: #{tpu_custom_call.1}
  #allocation0 [shape = 'u32[]', space=smem, size = 0x4, offset = 0x4, fixed_abs, tag = 'smem constant byte address 0x4 - core index']
  #allocation1 [shape = 'u32[144,128]{1,0:T(1,128)}', space=vmem, size = 0x12000, scoped, tag = 'internal scratch']
  %s0 = inlined_call_operand.vmem [shape: bf16[2,8,32], index: 0, kind: input, shape index: {}]
  %s1 = inlined_call_operand.vmem [shape: bf16[8,32], index: 1, kind: input, shape index: {}]
  %s2 = inlined_call_operand.vmem [shape: bf16[2,8,32], index: 2, kind: input, shape index: {}]
  %s3 = inlined_call_operand.vmem [shape: f32[2,8,1], index: 3, kind: input, shape index: {}]
  %s4 = inlined_call_operand.vmem [shape: f32[1,32], index: 4, kind: input, shape index: {}]
  %s5 = inlined_call_operand.vmem [shape: f32[1,32], index: 5, kind: input, shape index: {}]
  %s6 = inlined_call_operand.hbm [shape: bf16[2,8,32], index: 6, kind: output, shape index: {}]
  %s7 = sld [smem:[#allocation0]]
  $region57: #{tpu_custom_call.1} parent=0
    _
  %s9 = ssub.s32 1, %s7
  %s10 = scalar_select 0, %s9, %s7
  $region1: #{tpu_custom_call.1} parent=0
    #allocation2 [shape = 'u8[4096]{0}', space=vmem, size = 0x1000, scoped, tag = 'output window, operand 0']
    #allocation3 [shape = 's32[2]{0}', space=sflag, size = 0x8, scoped, tag = 'scoped memory for tpu_custom_call.1']
    %11 = vsyncpa [#allocation3], 0
    %s12 = scalar_lea.sflag [#allocation3], 1
    %13 = vsyncpa %s12, 0
    loop: start=0, step=1, limit=4
    $region2: #{tpu_custom_call.1} parent=1 // loop_pre_header
      _
    $region3: #{tpu_custom_call.1} parent=1 // loop_header
      %s15 = sphi 0, %s19
      %p16 = scmp.ge.s32.totalorder %s15, 4
      %s22 = sphi 0, %s34
      %s23 = sphi 0, %s30
      %s24 = sphi 0, %s22
      %s25 = sphi 0, %s23
      %s26 = sphi 0, %s24
      %s27 = sphi 0, %s25
      %s39 = sphi 0, %s41
      %s42 = sphi 0, %s39
      %s43 = sphi 0, %s42
      %s59 = sphi 0, %s43
      %s65 = sphi 0, %s67
      %s68 = sphi 0, %s65
      %s69 = sphi 0, %s68
      %s85 = sphi 0, %s69
      %s93 = sphi 0, %s95
      %s96 = sphi 0, %s93
      %s97 = sphi 0, %s96
      %s113 = sphi 0, %s97
      %s121 = sphi 0, %s123
      %s124 = sphi 0, %s121
      %s125 = sphi 0, %s124
      %s141 = sphi 0, %s125
      %s145 = sphi 0, %s145
      %s147 = sphi 0, %s145
      %s148 = sphi 0, %s147
      %s162 = sphi 0, %s148
      %s166 = sphi 0, %s166
      %s168 = sphi 0, %s166
      %s169 = sphi 0, %s168
      %s183 = sphi 0, %s169
      %s191 = sphi 0, %s193
      %s194 = sphi 0, %s191
      %s195 = sphi 0, %s194
      %s211 = sphi 0, %s195
    $region4: #{tpu_custom_call.1} parent=1 // loop_header_branch
      %18 = sbr.rel (%p16) target = $region8
    $region5: #{tpu_custom_call.1} parent=1 // loop_body
      %s20 = ssub.s32 %s15, 1
      %s21 = ssub.s32 %s15, 2
      %s28 = sadd.s32 1, %s23
      %p29 = scmp.ge.s32.totalorder %s28, 1
      %s30 = scalar_select %p29, 0, %s28
      %s31 = sadd.s32 1, %s22
      %s32 = scalar_select %p29, %s31, %s22
      %p33 = scmp.ge.s32.totalorder %s32, 2
      %s34 = scalar_select %p33, 0, %s32
      %s35 = ssub.s32 %s22, %s34
      %s36 = ssub.s32 %s23, %s30
      %s37 = sor.u32 %s35, %s36
      %p38 = scmp.eq.s32.totalorder %s37, 0
      %s40 = sadd.s32 %s39, 1
      %s41 = scalar_select %p38, %s39, %s40
      %p44 = pneg %p38
      %p45 = scmp.eq.s32.totalorder %s15, 1
      %p46 = por %p44, %p45
      %p47 = scmp.ne.s32.totalorder %s39, %s42
      %p48 = scmp.eq.s32.totalorder %s15, 0
      %p49 = por %p47, %p48
      %p50 = scmp.ne.s32.totalorder %s39, %s42
      %p51 = scmp.eq.s32.totalorder %s20, 1
      %p52 = por %p50, %p51
      %p53 = scmp.ne.s32.totalorder %s42, %s43
      %p54 = scmp.eq.s32.totalorder %s20, 0
      %p55 = por %p53, %p54
      %p56 = scmp.ne.s32.totalorder %s42, %s43
      %p57 = scmp.eq.s32.totalorder %s21, 1
      %p58 = por %p56, %p57
      %p60 = scmp.ne.s32.totalorder %s43, %s59
      %p61 = scmp.eq.s32.totalorder %s21, 0
      %p62 = por %p60, %p61
      %s63 = ssub.s32 %s23, %s30
      %p64 = scmp.eq.s32.totalorder %s63, 0
      %s66 = sadd.s32 %s65, 1
      %s67 = scalar_select %p64, %s65, %s66
      %p70 = pneg %p64
      %p71 = scmp.eq.s32.totalorder %s15, 1
      %p72 = por %p70, %p71
      %p73 = scmp.ne.s32.totalorder %s65, %s68
      %p74 = scmp.eq.s32.totalorder %s15, 0
      %p75 = por %p73, %p74
      %p76 = scmp.ne.s32.totalorder %s65, %s68
      %p77 = scmp.eq.s32.totalorder %s20, 1
      %p78 = por %p76, %p77
      %p79 = scmp.ne.s32.totalorder %s68, %s69
      %p80 = scmp.eq.s32.totalorder %s20, 0
      %p81 = por %p79, %p80
      %p82 = scmp.ne.s32.totalorder %s68, %s69
      %p83 = scmp.eq.s32.totalorder %s21, 1
      %p84 = por %p82, %p83
      %p86 = scmp.ne.s32.totalorder %s69, %s85
      %p87 = scmp.eq.s32.totalorder %s21, 0
      %p88 = por %p86, %p87
      %s89 = ssub.s32 %s22, %s34
      %s90 = ssub.s32 %s23, %s30
      %s91 = sor.u32 %s89, %s90
      %p92 = scmp.eq.s32.totalorder %s91, 0
      %s94 = sadd.s32 %s93, 1
      %s95 = scalar_select %p92, %s93, %s94
      %p98 = pneg %p92
      %p99 = scmp.eq.s32.totalorder %s15, 1
      %p100 = por %p98, %p99
      %p101 = scmp.ne.s32.totalorder %s93, %s96
      %p102 = scmp.eq.s32.totalorder %s15, 0
      %p103 = por %p101, %p102
      %p104 = scmp.ne.s32.totalorder %s93, %s96
      %p105 = scmp.eq.s32.totalorder %s20, 1
      %p106 = por %p104, %p105
      %p107 = scmp.ne.s32.totalorder %s96, %s97
      %p108 = scmp.eq.s32.totalorder %s20, 0
      %p109 = por %p107, %p108
      %p110 = scmp.ne.s32.totalorder %s96, %s97
      %p111 = scmp.eq.s32.totalorder %s21, 1
      %p112 = por %p110, %p111
      %p114 = scmp.ne.s32.totalorder %s97, %s113
      %p115 = scmp.eq.s32.totalorder %s21, 0
      %p116 = por %p114, %p115
      %s117 = ssub.s32 %s22, %s34
      %s118 = ssub.s32 %s23, %s30
      %s119 = sor.u32 %s117, %s118
      %p120 = scmp.eq.s32.totalorder %s119, 0
      %s122 = sadd.s32 %s121, 1
      %s123 = scalar_select %p120, %s121, %s122
      %p126 = pneg %p120
      %p127 = scmp.eq.s32.totalorder %s15, 1
      %p128 = por %p126, %p127
      %p129 = scmp.ne.s32.totalorder %s121, %s124
      %p130 = scmp.eq.s32.totalorder %s15, 0
      %p131 = por %p129, %p130
      %p132 = scmp.ne.s32.totalorder %s121, %s124
      %p133 = scmp.eq.s32.totalorder %s20, 1
      %p134 = por %p132, %p133
      %p135 = scmp.ne.s32.totalorder %s124, %s125
      %p136 = scmp.eq.s32.totalorder %s20, 0
      %p137 = por %p135, %p136
      %p138 = scmp.ne.s32.totalorder %s124, %s125
      %p139 = scmp.eq.s32.totalorder %s21, 1
      %p140 = por %p138, %p139
      %p142 = scmp.ne.s32.totalorder %s125, %s141
      %p143 = scmp.eq.s32.totalorder %s21, 0
      %p144 = por %p142, %p143
      %s146 = sadd.s32 %s145, 1
      %p149 = scmp.eq.s32.totalorder %s15, 1
      %p150 = scmp.ne.s32.totalorder %s145, %s147
      %p151 = scmp.eq.s32.totalorder %s15, 0
      %p152 = por %p150, %p151
      %p153 = scmp.ne.s32.totalorder %s145, %s147
      %p154 = scmp.eq.s32.totalorder %s20, 1
      %p155 = por %p153, %p154
      %p156 = scmp.ne.s32.totalorder %s147, %s148
      %p157 = scmp.eq.s32.totalorder %s20, 0
      %p158 = por %p156, %p157
      %p159 = scmp.ne.s32.totalorder %s147, %s148
      %p160 = scmp.eq.s32.totalorder %s21, 1
      %p161 = por %p159, %p160
      %p163 = scmp.ne.s32.totalorder %s148, %s162
      %p164 = scmp.eq.s32.totalorder %s21, 0
      %p165 = por %p163, %p164
      %s167 = sadd.s32 %s166, 1
      %p170 = scmp.eq.s32.totalorder %s15, 1
      %p171 = scmp.ne.s32.totalorder %s166, %s168
      %p172 = scmp.eq.s32.totalorder %s15, 0
      %p173 = por %p171, %p172
      %p174 = scmp.ne.s32.totalorder %s166, %s168
      %p175 = scmp.eq.s32.totalorder %s20, 1
      %p176 = por %p174, %p175
      %p177 = scmp.ne.s32.totalorder %s168, %s169
      %p178 = scmp.eq.s32.totalorder %s20, 0
      %p179 = por %p177, %p178
      %p180 = scmp.ne.s32.totalorder %s168, %s169
      %p181 = scmp.eq.s32.totalorder %s21, 1
      %p182 = por %p180, %p181
      %p184 = scmp.ne.s32.totalorder %s169, %s183
      %p185 = scmp.eq.s32.totalorder %s21, 0
      %p186 = por %p184, %p185
      %s187 = ssub.s32 %s22, %s34
      %s188 = ssub.s32 %s23, %s30
      %s189 = sor.u32 %s187, %s188
      %p190 = scmp.eq.s32.totalorder %s189, 0
      %s192 = sadd.s32 %s191, 1
      %s193 = scalar_select %p190, %s191, %s192
      %p196 = pneg %p190
      %p197 = scmp.eq.s32.totalorder %s15, 1
      %p198 = por %p196, %p197
      %p199 = scmp.ne.s32.totalorder %s191, %s194
      %p200 = scmp.eq.s32.totalorder %s15, 0
      %p201 = por %p199, %p200
      %p202 = scmp.ne.s32.totalorder %s191, %s194
      %p203 = scmp.eq.s32.totalorder %s20, 1
      %p204 = por %p202, %p203
      %p205 = scmp.ne.s32.totalorder %s194, %s195
      %p206 = scmp.eq.s32.totalorder %s20, 0
      %p207 = por %p205, %p206
      %p208 = scmp.ne.s32.totalorder %s194, %s195
      %p209 = scmp.eq.s32.totalorder %s21, 1
      %p210 = por %p208, %p209
      %p212 = scmp.ne.s32.totalorder %s195, %s211
      %p213 = scmp.eq.s32.totalorder %s21, 0
      %p214 = por %p212, %p213
      %p215 = scmp.le.s32.totalorder 1, %s15
      %p216 = scmp.lt.s32.totalorder %s15, 3
      %p217 = pnand %p215, %p216
      %p218 = pneg %p217
      // Predicated region
      $region9: #{tpu_custom_call.1} parent=5 // pred_check
        _
      $region10: #{tpu_custom_call.1} parent=5 // pred_check_branch
        %220 = sbr.rel (%p217) target = $region12
      $region11: #{tpu_custom_call.1} parent=5 // pred_region
        %s221 = ssub.s32 %s15, 1
        // Predicated region
        $region13: #{tpu_custom_call.1} parent=11 // pred_check
          %p222 = pneg %p81
        $region14: #{tpu_custom_call.1} parent=11 // pred_check_branch
          %224 = sbr.rel (%p222) target = $region16
        $region15: #{tpu_custom_call.1} parent=11 // pred_region
          %p225 = scmp.lt.s32.totalorder %s25, 0
          %s226 = scalar_select %p225, %s25, 0
          %s227 = smul.addr %s226, 4
          %s228 = scalar_lea.vmem %s1, %s227
        $region16: #{tpu_custom_call.1} parent=11 // pred_fallthru
          _
        // Predicated region
        $region17: #{tpu_custom_call.1} parent=11 // pred_check
          %p229 = pneg %p158
        $region18: #{tpu_custom_call.1} parent=11 // pred_check_branch
          %231 = sbr.rel (%p229) target = $region20
        $region19: #{tpu_custom_call.1} parent=11 // pred_region
          _
        $region20: #{tpu_custom_call.1} parent=11 // pred_fallthru
          _
        // Predicated region
        $region21: #{tpu_custom_call.1} parent=11 // pred_check
          %p232 = pneg %p179
        $region22: #{tpu_custom_call.1} parent=11 // pred_check_branch
          %234 = sbr.rel (%p232) target = $region24
        $region23: #{tpu_custom_call.1} parent=11 // pred_region
          _
        $region24: #{tpu_custom_call.1} parent=11 // pred_fallthru
          _
      $region12: #{tpu_custom_call.1} parent=5 // pred_fallthru
        _
      %p235 = scmp.lt.s32.totalorder %s15, 2
      // Predicated region
      $region25: #{tpu_custom_call.1} parent=5 // pred_check
        %p236 = pneg %p235
      $region26: #{tpu_custom_call.1} parent=5 // pred_check_branch
        %238 = sbr.rel (%p236) target = $region28
      $region27: #{tpu_custom_call.1} parent=5 // pred_region
        // Predicated region
        $region29: #{tpu_custom_call.1} parent=27 // pred_check
          %p239 = pneg %p49
        $region30: #{tpu_custom_call.1} parent=27 // pred_check_branch
          %241 = sbr.rel (%p239) target = $region32
        $region31: #{tpu_custom_call.1} parent=27 // pred_region
          %p242 = scmp.lt.s32.totalorder %s22, 1
          %s243 = scalar_select %p242, %s22, 1
          %p244 = scmp.lt.s32.totalorder %s23, 0
          %s245 = scalar_select %p244, %s23, 0
          %s246 = sadd.s32 %s245, %s243
          %s247 = smul.addr %s246, 4
          %s248 = scalar_lea.vmem %s0, %s247
        $region32: #{tpu_custom_call.1} parent=27 // pred_fallthru
          _
        // Predicated region
        $region33: #{tpu_custom_call.1} parent=27 // pred_check
          %p249 = pneg %p103
        $region34: #{tpu_custom_call.1} parent=27 // pred_check_branch
          %251 = sbr.rel (%p249) target = $region36
        $region35: #{tpu_custom_call.1} parent=27 // pred_region
          %p252 = scmp.lt.s32.totalorder %s22, 1
          %s253 = scalar_select %p252, %s22, 1
          %p254 = scmp.lt.s32.totalorder %s23, 0
          %s255 = scalar_select %p254, %s23, 0
          %s256 = sadd.s32 %s255, %s253
          %s257 = smul.addr %s256, 4
          %s258 = scalar_lea.vmem %s2, %s257
        $region36: #{tpu_custom_call.1} parent=27 // pred_fallthru
          _
        // Predicated region
        $region37: #{tpu_custom_call.1} parent=27 // pred_check
          %p259 = pneg %p131
        $region38: #{tpu_custom_call.1} parent=27 // pred_check_branch
          %261 = sbr.rel (%p259) target = $region40
        $region39: #{tpu_custom_call.1} parent=27 // pred_region
          %p262 = scmp.lt.s32.totalorder %s22, 1
          %s263 = scalar_select %p262, %s22, 1
          %p264 = scmp.lt.s32.totalorder %s23, 0
          %s265 = scalar_select %p264, %s23, 0
          %s266 = sadd.s32 %s265, %s263
          %s267 = smul.addr %s266, 8
          %s268 = scalar_lea.vmem %s3, %s267
        $region40: #{tpu_custom_call.1} parent=27 // pred_fallthru
          _
      $region28: #{tpu_custom_call.1} parent=5 // pred_fallthru
        _
      %p269 = scmp.le.s32.totalorder 1, %s15
      %p270 = scmp.lt.s32.totalorder %s15, 3
      %p271 = pnand %p269, %p270
      %p272 = pneg %p271
      // Predicated region
      $region41: #{tpu_custom_call.1} parent=5 // pred_check
        _
      $region42: #{tpu_custom_call.1} parent=5 // pred_check_branch
        %274 = sbr.rel (%p271) target = $region44
      $region43: #{tpu_custom_call.1} parent=5 // pred_region
        %s275 = ssub.s32 %s15, 1
        %p276 = scmp.lt.s32.totalorder %s24, 1
        %s277 = scalar_select %p276, %s24, 1
        %p278 = scmp.lt.s32.totalorder %s25, 0
        %s279 = scalar_select %p278, %s25, 0
        %s280 = sadd.s32 %s279, %s277
        %s281 = smul.addr %s280, 4
        %s282 = scalar_lea.vmem %s0, %s281
        %p283 = pneg %p55
        %p284 = pneg %p52
        %p285 = scmp.lt.s32.totalorder %s25, 0
        %s286 = scalar_select %p285, %s25, 0
        %s287 = smul.addr %s286, 4
        %s288 = scalar_lea.vmem %s1, %s287
        %p289 = pneg %p81
        %p290 = pneg %p78
        %p291 = scmp.lt.s32.totalorder %s24, 1
        %s292 = scalar_select %p291, %s24, 1
        %p293 = scmp.lt.s32.totalorder %s25, 0
        %s294 = scalar_select %p293, %s25, 0
        %s295 = sadd.s32 %s294, %s292
        %s296 = smul.addr %s295, 4
        %s297 = scalar_lea.vmem %s2, %s296
        %p298 = pneg %p109
        %p299 = pneg %p106
        %p300 = scmp.lt.s32.totalorder %s24, 1
        %s301 = scalar_select %p300, %s24, 1
        %p302 = scmp.lt.s32.totalorder %s25, 0
        %s303 = scalar_select %p302, %s25, 0
        %s304 = sadd.s32 %s303, %s301
        %s305 = smul.addr %s304, 8
        %s306 = scalar_lea.vmem %s3, %s305
        %p307 = pneg %p137
        %p308 = pneg %p134
        %p309 = pneg %p158
        %p310 = pneg %p155
        %p311 = pneg %p179
        %p312 = pneg %p176
        %p313 = pneg %p207
        %p314 = pneg %p204
        %s315 = sand.u32 %s194, 1
        %s316 = scalar_lea.sflag [#allocation3], %s315
        %s317 = sand.u32 %s194, 1
        %s318 = smul.addr %s317, 4
        %s319 = scalar_lea.vmem [#allocation2], %s318
        %p320 = scmp.lt.s32.totalorder %s24, 1
        %s321 = scalar_select %p320, %s24, 1
        %p322 = scmp.lt.s32.totalorder %s25, 0
        %s323 = scalar_select %p322, %s25, 0
        %s324 = sadd.s32 %s323, %s321
        %s325 = smul.addr %s324, 4
        %s326 = scalar_lea.vmem %s0, %s325
        %p327 = scmp.lt.s32.totalorder %s25, 0
        %s328 = scalar_select %p327, %s25, 0
        %s329 = smul.addr %s328, 4
        %s330 = scalar_lea.vmem %s1, %s329
        %p331 = scmp.lt.s32.totalorder %s24, 1
        %s332 = scalar_select %p331, %s24, 1
        %p333 = scmp.lt.s32.totalorder %s25, 0
        %s334 = scalar_select %p333, %s25, 0
        %s335 = sadd.s32 %s334, %s332
        %s336 = smul.addr %s335, 4
        %s337 = scalar_lea.vmem %s2, %s336
        %p338 = scmp.lt.s32.totalorder %s24, 1
        %s339 = scalar_select %p338, %s24, 1
        %p340 = scmp.lt.s32.totalorder %s25, 0
        %s341 = scalar_select %p340, %s25, 0
        %s342 = sadd.s32 %s341, %s339
        %s343 = smul.addr %s342, 8
        %s344 = scalar_lea.vmem %s3, %s343
        %v345 = vld [vmem:[%s326] sm:$0xf]
        %v346 = vunpack.c.l.bf16 %v345
        %v347 = vld [vmem:[%s330] sm:$0xf]
        %v348 = vunpack.c.l.bf16 %v347
        %v349 = vadd.f32 %v346, %v348
        %v350 = vld [vmem:[%s337] sm:$0xf]
        %v351 = vunpack.c.l.bf16 %v350
        %v352 = vadd.f32 %v349, %v351
        %vm353 = vcmask 261120
        %v354 = vsel %vm353, %v352, 0.0
        %355 = vadd.xlane.f32.xlu0 %v354
        %v356 = vpop.xlane.xlu0 %355
        %v357 = vrcp.pop 32.0
        %v358 = vmul.f32 %v356, %v357
        %v359 = vsub.f32 %v352, %v358
        %v360 = vmul.f32 %v359, %v359
        %v361 = vsel %vm353, %v360, 0.0
        %362 = vadd.xlane.f32.xlu0 %v361
        %v363 = vpop.xlane.xlu0 %362
        %v364 = vmul.f32 %v363, %v357
        %v365 = vadd.f32 %v364, 1e-12
        %v366 = vrsqrt.pop %v365
        %v367 = vmul.f32 %v359, %v366
        %v368 = vld [vmem:[%s4] sm:$0x1]
        %v370 = vlaneseq
        %v371 = vshrl.u32 %v370, 7
        %v372 = vsub.s32 0, %v371
        %v373 = vrot.slane %v368, %v372
        %v375 = vmul.f32 %v367, %v373
        %v376 = vld [vmem:[%s5] sm:$0x1]
        %v378 = vlaneseq
        %v379 = vshrl.u32 %v378, 7
        %v380 = vsub.s32 0, %v379
        %v381 = vrot.slane %v376, %v380
        %v383 = vadd.f32 %v375, %v381
        %v384 = vld [vmem:[%s344] sm:$0xff]
        %386 = vset.pattern.permute.xlu0 0
        %387 = vperm.xlu0 %386, %v384
        %v388 = vpop.permute.xlu0 %387
        %v390 = vmul.f32 %v383, %v388
        %v391 = vpack.c.bf16 %v390, %v390
        %vm392 = vcmask 257024
        %393 = vst.msk [vmem:[%s319] sm:$0xf] %vm392, %v391
        %s394 = sand.u32 %s194, 1
        %s395 = scalar_lea.sflag [#allocation3], %s394
        %s396 = sand.u32 %s194, 1
        %s397 = smul.addr %s396, 4
        %s398 = scalar_lea.vmem [#allocation2], %s397
        // Predicated region
        $region45: #{tpu_custom_call.1} parent=43 // pred_check
          %p399 = pneg %p204
        $region46: #{tpu_custom_call.1} parent=43 // pred_check_branch
          %401 = sbr.rel (%p399) target = $region48
        $region47: #{tpu_custom_call.1} parent=43 // pred_region
          %s403 = ssub.s32 64, 64
          %404 = vsyncadd %s395, %s403
          %s405 = sadd.s32 %s25, %s24
          %s406 = smul.addr %s405, 64
          %s407 = scalar_lea.hbm %s6, %s406
          %s409 = sshll.u32 %s398, 4
          %s410 = int_to_ptr.vmem [resolvable:$true] %s409
          %412 = dma.vmem_to_hbm [thread:$0]  %s410, 64, %s407, %s395
        $region48: #{tpu_custom_call.1} parent=43 // pred_fallthru
          _
      $region44: #{tpu_custom_call.1} parent=5 // pred_fallthru
        _
      %p413 = scmp.le.s32.totalorder 2, %s15
      // Predicated region
      $region49: #{tpu_custom_call.1} parent=5 // pred_check
        %p414 = pneg %p413
      $region50: #{tpu_custom_call.1} parent=5 // pred_check_branch
        %416 = sbr.rel (%p414) target = $region52
      $region51: #{tpu_custom_call.1} parent=5 // pred_region
        %s417 = ssub.s32 %s15, 2
        // Predicated region
        $region53: #{tpu_custom_call.1} parent=51 // pred_check
          %p418 = pneg %p210
        $region54: #{tpu_custom_call.1} parent=51 // pred_check_branch
          %420 = sbr.rel (%p418) target = $region56
        $region55: #{tpu_custom_call.1} parent=51 // pred_region
          %s421 = sand.u32 %s195, 1
          %s422 = scalar_lea.sflag [#allocation3], %s421
          %s423 = sand.u32 %s195, 1
          %s424 = smul.addr %s423, 4
          %s425 = scalar_lea.vmem [#allocation2], %s424
          %426 = dma.done %s422, 64
        $region56: #{tpu_custom_call.1} parent=51 // pred_fallthru
          _
      $region52: #{tpu_custom_call.1} parent=5 // pred_fallthru
        _
    $region6: #{tpu_custom_call.1} parent=1 // loop_footer
      %s19 = sadd.s32 1, %s15
    $region7: #{tpu_custom_call.1} parent=1 // loop_footer_branch
      %14 = sbr.rel target = $region3
    $region8: #{tpu_custom_call.1} parent=1 // loop_exit
      _
    %427 = vsyncpa [#allocation3], 1
    %s428 = scalar_lea.sflag [#allocation3], 1
    %429 = vsyncpa %s428, 1

</llo_original>
